<compile_context>
chip_gen: v6e
topology: v6e:2x2x1
jax: 0.10.0
libtpu: 0.0.40
codegen_flags: <defaults>
</compile_context>

<pallas_src>
import functools

import jax
import jax.numpy as jnp
from jax.experimental import pallas as pl
from jax.experimental.pallas import tpu as pltpu

EPS = 1e-5
LANE = 128            # feature dim padded to a multiple of the lane width
DEF_ROW_TILE = 512    # rows per grid step (sweepable; ~85% HBM roofline regime)
DEF_N_TILE_CAP = 1024  # max W column tile -> bounds VMEM regardless of d_model


def _round_up(n, m):
    return (n + m - 1) // m * m


def _pick_n_tile(d_pad, cap=DEF_N_TILE_CAP):
    """Largest multiple of 128 that divides d_pad and is <= cap."""
    cap = min(cap, d_pad)
    for cand in range(cap, 0, -LANE):
        if d_pad % cand == 0:
            return cand
    return LANE


def _vmem_limit_bytes():
    # Generation-aware VMEM budget: ~85% of physical capacity (v7x: 64 MiB/TC,
    # v5e/v6e: 128 MiB). The broad except here only guards the capability
    # query (NOT the pallas_call) and falls back to a safe 48 MiB.
    try:
        cap = getattr(pltpu.get_tpu_info(), "vmem_capacity_bytes", None)
        if cap:
            return int(cap * 0.85)
    except Exception:
        pass
    return 48 * 1024 * 1024


def _residual_kernel(x_ref, gamma_ref, beta_ref, w_ref, b_ref, o_ref, xn_ref,
                     *, d_true, eps, single_col_tile):
    """out[:, cols_j] = x[:, cols_j] + (LayerNorm(x) @ W[:, cols_j] + b[cols_j])."""
    j = pl.program_id(1)
    n_tile = o_ref.shape[-1]
    d_pad = x_ref.shape[-1]

    # LayerNorm once per row tile (j == 0); reused from VMEM for all W column
    # tiles of the same row tile (j iterates fastest / sequentially).
    @pl.when(j == 0)
    def _():
        x = x_ref[...].astype(jnp.float32)
        if d_pad != d_true:  # static trace-time branch: mask padded lanes once
            lane = jax.lax.broadcasted_iota(jnp.int32, (1, d_pad), 1)
            x = jnp.where(lane < d_true, x, 0.0)
        inv_d = 1.0 / d_true
        mean = jnp.sum(x, axis=-1, keepdims=True) * inv_d
        ex2 = jnp.sum(x * x, axis=-1, keepdims=True) * inv_d
        var = jnp.maximum(ex2 - mean * mean, 0.0)
        xn = (x - mean) * jax.lax.rsqrt(var + eps)
        xn = xn * gamma_ref[...] + beta_ref[...]
        xn_ref[...] = xn.astype(jnp.bfloat16)

    # sub_layer: Linear on the MXU, bf16 operands, f32 accumulation.
    sub = jnp.dot(xn_ref[...], w_ref[...], preferred_element_type=jnp.float32)
    sub = sub + b_ref[...]

    # dropout: module default dr_rate=0 -> identity.
    # TODO(synk): for dr_rate > 0 use pltpu.prng_seed + pltpu.stateful_bernoulli
    #             and scale by 1/(1-p) to match torch.nn.Dropout in train mode.

    # residual add against the matching columns of the (resident) x block
    if single_col_tile:
        x_res = x_ref[...].astype(jnp.float32)
    else:
        col0 = pl.multiple_of(j * n_tile, n_tile)
        x_res = x_ref[:, pl.ds(col0, n_tile)].astype(jnp.float32)
    o_ref[...] = (sub + x_res).astype(o_ref.dtype)


def residual_connection(x, gamma, beta, w, b, *, dr_rate=0.0,
                        row_tile=DEF_ROW_TILE, n_tile_cap=DEF_N_TILE_CAP):
    """Fused  x + Linear(LayerNorm(x))  for x of shape (..., d_model)."""
    assert dr_rate == 0.0, "only dr_rate=0 (the module default) is implemented"
    d = x.shape[-1]
    lead = x.shape[:-1]
    x2 = x.reshape(-1, d)
    r = x2.shape[0]

    d_pad = _round_up(d, LANE)
    n_tile = _pick_n_tile(d_pad, n_tile_cap)
    # multiple of 16 so both f32 and bf16 activations satisfy sublane tiling
    row_tile = _round_up(max(16, min(row_tile, _round_up(r, 16))), 16)

    # Rows are NOT padded: grid uses ceil-div and Pallas masks the ragged last
    # row block (rows are fully independent through LN + Linear + residual).
    if d_pad == d:
        x_p = x2
    else:  # feature lanes zero-padded (and additionally masked in-kernel)
        x_p = jnp.zeros((r, d_pad), x.dtype).at[:, :d].set(x2)

    def prep_row(v):
        v = v.astype(jnp.float32)
        if d_pad == d:
            return v.reshape(1, d_pad)
        return jnp.zeros((1, d_pad), jnp.float32).at[0, :d].set(v)

    g_p, be_p, b_p = prep_row(gamma), prep_row(beta), prep_row(b)

    w_p = w.astype(jnp.bfloat16)  # pre-cast ONCE (MXU-native)
    if d_pad != d:
        w_p = jnp.zeros((d_pad, d_pad), jnp.bfloat16).at[:d, :d].set(w_p)

    kernel = functools.partial(_residual_kernel, d_true=d, eps=EPS,
                               single_col_tile=(d_pad // n_tile == 1))
    out = pl.pallas_call(
        kernel,
        out_shape=jax.ShapeDtypeStruct((r, d_pad), x.dtype),
        grid_spec=pltpu.PrefetchScalarGridSpec(
            num_scalar_prefetch=0,
            grid=(pl.cdiv(r, row_tile), d_pad // n_tile),
            in_specs=[
                pl.BlockSpec((row_tile, d_pad), lambda i, j: (i, 0)),  # x rows
                pl.BlockSpec((1, d_pad), lambda i, j: (0, 0)),         # gamma
                pl.BlockSpec((1, d_pad), lambda i, j: (0, 0)),         # beta
                pl.BlockSpec((d_pad, n_tile), lambda i, j: (0, j)),    # W cols
                pl.BlockSpec((1, n_tile), lambda i, j: (0, j)),        # bias
            ],
            out_specs=pl.BlockSpec((row_tile, n_tile), lambda i, j: (i, j)),
            scratch_shapes=[pltpu.VMEM((row_tile, d_pad), jnp.bfloat16)],
        ),
        compiler_params=pltpu.CompilerParams(
            dimension_semantics=("parallel", "arbitrary"),
            vmem_limit_bytes=_vmem_limit_bytes(),
        ),
    )(x_p, g_p, be_p, w_p, b_p)

    if d_pad != d:
        out = out[:, :d]
    return out.reshape(*lead, d)


if __name__ == "__main__":
    key = jax.random.PRNGKey(0)

    def make_inputs(k, batch, seq, d_model, dtype):
        kx, kg, kb, kw, kbias = jax.random.split(k, 5)
        x = jax.random.normal(kx, (batch, seq, d_model), jnp.float32).astype(dtype)
        gamma = jnp.ones((d_model,), jnp.float32) + 0.01 * jax.random.normal(kg, (d_model,))
        beta = 0.01 * jax.random.normal(kb, (d_model,), dtype=jnp.float32)
        w = jax.random.normal(kw, (d_model, d_model), dtype=jnp.float32) / jnp.sqrt(d_model)
        b = 0.01 * jax.random.normal(kbias, (d_model,), dtype=jnp.float32)
        return x, gamma, beta, w, b

    def reference(x, gamma, beta, w, b):
        # Matches kernel precision: f32 LayerNorm, bf16 matmul with f32 accumulate.
        xf = x.astype(jnp.float32)
        mean = jnp.mean(xf, axis=-1, keepdims=True)
        cen = xf - mean
        var = jnp.mean(cen * cen, axis=-1, keepdims=True)
        xn = cen * jax.lax.rsqrt(var + EPS)
        xn = xn * gamma + beta
        sub = jnp.dot(xn.astype(jnp.bfloat16), w.astype(jnp.bfloat16),
                      preferred_element_type=jnp.float32) + b
        return (sub + xf).astype(x.dtype)

    cases = (
        ((2, 8, 32), jnp.float32, 2e-2),    # lane-padding path, tiny rows
        ((2, 512, 128), jnp.float32, 2e-2),  # lane-aligned, multi-row-tile grid
        ((3, 171, 128), jnp.bfloat16, 6e-2),  # ragged last row block + bf16 I/O
    )
    keys = jax.random.split(key, len(cases))
    for k, ((batch, seq, d_model), dtype, tol) in zip(keys, cases):
        x, gamma, beta, w, b = make_inputs(k, batch, seq, d_model, dtype)
        out = jax.block_until_ready(residual_connection(x, gamma, beta, w, b))
        ref = reference(x, gamma, beta, w, b)
        assert out.shape == x.shape and out.dtype == x.dtype
        err = jnp.max(jnp.abs(out.astype(jnp.float32) - ref.astype(jnp.float32)))
        assert jnp.allclose(out.astype(jnp.float32), ref.astype(jnp.float32),
                            atol=tol, rtol=tol), (
            f"mismatch vs reference at {(batch, seq, d_model, dtype)}: max err {err}")

    print("KERNEL_OK")
</pallas_src>

<mosaic_0001>
module attributes {stable_mosaic.version = 11 : i64} {
  func.func @_residual_kernel(%arg0: i32, %arg1: i32, %arg2: memref<16x128xf32, #tpu.memory_space<vmem>>, %arg3: memref<1x128xf32, #tpu.memory_space<vmem>>, %arg4: memref<1x128xf32, #tpu.memory_space<vmem>>, %arg5: memref<128x128xbf16, #tpu.memory_space<vmem>>, %arg6: memref<1x128xf32, #tpu.memory_space<vmem>>, %arg7: memref<16x128xf32, #tpu.memory_space<vmem>>, %arg8: memref<16x128xbf16, #tpu.memory_space<vmem>>) attributes {dimension_semantics = [#tpu.dimension_semantics<parallel>, #tpu.dimension_semantics<arbitrary>], iteration_bounds = array<i64: 1, 1>, scalar_prefetch = 0 : i64, scratch_operands = 1 : i64, tpu.core_type = #tpu.core_type<tc>, window_params = [{transform_indices = @transform_0, window_bounds = array<i64: 16, 128>}, {pipeline_mode = #tpu.pipeline_mode<synchronous>, transform_indices = @transform_1, window_bounds = array<i64: 1, 128>}, {pipeline_mode = #tpu.pipeline_mode<synchronous>, transform_indices = @transform_2, window_bounds = array<i64: 1, 128>}, {transform_indices = @transform_3, window_bounds = array<i64: 128, 128>}, {transform_indices = @transform_4, window_bounds = array<i64: 1, 128>}, {transform_indices = @transform_5, window_bounds = array<i64: 16, 128>}]} {
    %c0_i32 = arith.constant 0 : i32
    %0 = arith.cmpi eq, %arg1, %c0_i32 : i32
    %1 = arith.extui %0 : i1 to i32
    %c0_i32_0 = arith.constant 0 : i32
    %2 = arith.cmpi ne, %1, %c0_i32_0 : i32
    scf.if %2 {
      %c0_10 = arith.constant 0 : index
      %c0_11 = arith.constant 0 : index
      %12 = vector.load %arg2[%c0_10, %c0_11] : memref<16x128xf32, #tpu.memory_space<vmem>>, vector<16x128xf32>
      %13 = tpu.iota {dimensions = array<i32: 1>} : vector<1x128xi32>
      %c32_i32 = arith.constant 32 : i32
      %14 = vector.broadcast %c32_i32 : i32 to vector<1x128xi32>
      %15 = arith.cmpi slt, %13, %14 : vector<1x128xi32>
      %cst_12 = arith.constant 0.000000e+00 : f32
      %16 = vector.shape_cast %15 : vector<1x128xi1> to vector<1x128xi1>
      %17 = vector.broadcast %16 : vector<1x128xi1> to vector<16x128xi1>
      %18 = vector.broadcast %cst_12 : f32 to vector<16x128xf32>
      %19 = arith.select %17, %12, %18 : vector<16x128xi1>, vector<16x128xf32>
      %cst_13 = arith.constant dense<0.000000e+00> : vector<16xf32>
      %20 = vector.multi_reduction <add>, %19, %cst_13 [1] : vector<16x128xf32> to vector<16xf32>
      %21 = vector.shape_cast %20 : vector<16xf32> to vector<16x1xf32>
      %cst_14 = arith.constant 3.125000e-02 : f32
      %22 = vector.broadcast %cst_14 : f32 to vector<16x1xf32>
      %23 = arith.mulf %21, %22 : vector<16x1xf32>
      %24 = arith.mulf %19, %19 : vector<16x128xf32>
      %cst_15 = arith.constant dense<0.000000e+00> : vector<16xf32>
      %25 = vector.multi_reduction <add>, %24, %cst_15 [1] : vector<16x128xf32> to vector<16xf32>
      %26 = vector.shape_cast %25 : vector<16xf32> to vector<16x1xf32>
      %cst_16 = arith.constant 3.125000e-02 : f32
      %27 = vector.broadcast %cst_16 : f32 to vector<16x1xf32>
      %28 = arith.mulf %26, %27 : vector<16x1xf32>
      %29 = arith.mulf %23, %23 : vector<16x1xf32>
      %30 = arith.subf %28, %29 : vector<16x1xf32>
      %cst_17 = arith.constant 0.000000e+00 : f32
      %31 = vector.broadcast %cst_17 : f32 to vector<16x1xf32>
      %32 = arith.maximumf %30, %31 : vector<16x1xf32>
      %33 = vector.broadcast %23 : vector<16x1xf32> to vector<16x128xf32>
      %34 = arith.subf %19, %33 : vector<16x128xf32>
      %cst_18 = arith.constant 9.99999974E-6 : f32
      %35 = vector.broadcast %cst_18 : f32 to vector<16x1xf32>
      %36 = arith.addf %32, %35 : vector<16x1xf32>
      %37 = math.rsqrt %36 : vector<16x1xf32>
      %38 = vector.broadcast %37 : vector<16x1xf32> to vector<16x128xf32>
      %39 = arith.mulf %34, %38 : vector<16x128xf32>
      %c0_19 = arith.constant 0 : index
      %c0_20 = arith.constant 0 : index
      %40 = vector.load %arg3[%c0_19, %c0_20] : memref<1x128xf32, #tpu.memory_space<vmem>>, vector<1x128xf32>
      %41 = vector.broadcast %40 : vector<1x128xf32> to vector<16x128xf32>
      %42 = arith.mulf %39, %41 : vector<16x128xf32>
      %c0_21 = arith.constant 0 : index
      %c0_22 = arith.constant 0 : index
      %43 = vector.load %arg4[%c0_21, %c0_22] : memref<1x128xf32, #tpu.memory_space<vmem>>, vector<1x128xf32>
      %44 = vector.broadcast %43 : vector<1x128xf32> to vector<16x128xf32>
      %45 = arith.addf %42, %44 : vector<16x128xf32>
      %46 = arith.truncf %45 : vector<16x128xf32> to vector<16x128xbf16>
      %c0_23 = arith.constant 0 : index
      %c0_24 = arith.constant 0 : index
      %47 = vector.load %arg8[%c0_23, %c0_24] : memref<16x128xbf16, #tpu.memory_space<vmem>>, vector<16x128xbf16>
      tpu.vector_store %arg8[%c0_23, %c0_24], %46 {strides = array<i32>} : memref<16x128xbf16, #tpu.memory_space<vmem>>, vector<16x128xbf16>,
    } else {
    }
    %c0 = arith.constant 0 : index
    %c0_1 = arith.constant 0 : index
    %3 = vector.load %arg8[%c0, %c0_1] : memref<16x128xbf16, #tpu.memory_space<vmem>>, vector<16x128xbf16>
    %c0_2 = arith.constant 0 : index
    %c0_3 = arith.constant 0 : index
    %4 = vector.load %arg5[%c0_2, %c0_3] : memref<128x128xbf16, #tpu.memory_space<vmem>>, vector<128x128xbf16>
    %cst = arith.constant dense<0.000000e+00> : vector<16x128xf32>
    %5 = tpu.matmul %3, %4, %cst {dimension_numbers = #tpu.dot_dimension_numbers<[1], [0], [0], [1], [0, 0, 1, 1], [], []>} : vector<16x128xbf16>, vector<128x128xbf16>, vector<16x128xf32> -> vector<16x128xf32>
    %c0_4 = arith.constant 0 : index
    %c0_5 = arith.constant 0 : index
    %6 = vector.load %arg6[%c0_4, %c0_5] : memref<1x128xf32, #tpu.memory_space<vmem>>, vector<1x128xf32>
    %7 = vector.broadcast %6 : vector<1x128xf32> to vector<16x128xf32>
    %8 = arith.addf %5, %7 : vector<16x128xf32>
    %c0_6 = arith.constant 0 : index
    %c0_7 = arith.constant 0 : index
    %9 = vector.load %arg2[%c0_6, %c0_7] : memref<16x128xf32, #tpu.memory_space<vmem>>, vector<16x128xf32>
    %10 = arith.addf %8, %9 : vector<16x128xf32>
    %c0_8 = arith.constant 0 : index
    %c0_9 = arith.constant 0 : index
    %11 = vector.load %arg7[%c0_8, %c0_9] : memref<16x128xf32, #tpu.memory_space<vmem>>, vector<16x128xf32>
    tpu.vector_store %arg7[%c0_8, %c0_9], %10 {strides = array<i32>} : memref<16x128xf32, #tpu.memory_space<vmem>>, vector<16x128xf32>,
    return
  }
  func.func @transform_0(%arg0: i32, %arg1: i32) -> (i32, i32) {
    %c0_i32 = arith.constant 0 : i32
    %c0_i32_0 = arith.constant 0 : i32
    return %arg0, %c0_i32 : i32, i32
  }
  func.func @transform_1(%arg0: i32, %arg1: i32) -> (i32, i32) {
    %c0_i32 = arith.constant 0 : i32
    %c0_i32_0 = arith.constant 0 : i32
    %c0_i32_1 = arith.constant 0 : i32
    return %c0_i32, %c0_i32_0 : i32, i32
  }
  func.func @transform_2(%arg0: i32, %arg1: i32) -> (i32, i32) {
    %c0_i32 = arith.constant 0 : i32
    %c0_i32_0 = arith.constant 0 : i32
    %c0_i32_1 = arith.constant 0 : i32
    return %c0_i32, %c0_i32_0 : i32, i32
  }
  func.func @transform_3(%arg0: i32, %arg1: i32) -> (i32, i32) {
    %c0_i32 = arith.constant 0 : i32
    %c0_i32_0 = arith.constant 0 : i32
    return %c0_i32, %arg1 : i32, i32
  }
  func.func @transform_4(%arg0: i32, %arg1: i32) -> (i32, i32) {
    %c0_i32 = arith.constant 0 : i32
    %c0_i32_0 = arith.constant 0 : i32
    return %c0_i32, %arg1 : i32, i32
  }
  func.func @transform_5(%arg0: i32, %arg1: i32) -> (i32, i32) {
    %c0_i32 = arith.constant 0 : i32
    return %arg0, %arg1 : i32, i32
  }
}

</mosaic_0001>

<llo_original>
// kernel: tpu_custom_call.1
$region0: #{tpu_custom_call.1}
  #allocation0 [shape = 'u32[]', space=smem, size = 0x4, offset = 0x4, fixed_abs, tag = 'smem constant byte address 0x4 - core index']
  #allocation1 [shape = 'u32[144,128]{1,0:T(1,128)}', space=vmem, size = 0x12000, scoped, tag = 'internal scratch']
  #allocation2 [shape = 'bf16[16,128]{1,0:T(8,128)(2,1)}', space=vmem, size = 0x1000, scoped, tag = 'scratch operand']
  %s0 = inlined_call_operand.hbm [shape: f32[16,128], index: 0, kind: input, shape index: {}]
  %s1 = inlined_call_operand.vmem [shape: f32[1,128], index: 1, kind: input, shape index: {}]
  %s2 = inlined_call_operand.vmem [shape: f32[1,128], index: 2, kind: input, shape index: {}]
  %s3 = inlined_call_operand.hbm [shape: bf16[128,128], index: 3, kind: input, shape index: {}]
  %s4 = inlined_call_operand.vmem [shape: f32[1,128], index: 4, kind: input, shape index: {}]
  %s5 = inlined_call_operand.hbm [shape: f32[16,128], index: 5, kind: output, shape index: {}]
  %s6 = sld [smem:[#allocation0]]
  $region42: #{tpu_custom_call.1} parent=0
    _
  %s8 = ssub.s32 1, %s6
  %s9 = scalar_select 0, %s8, %s6
  $region1: #{tpu_custom_call.1} parent=0
    #allocation3 [shape = 'u8[8192]{0}', space=vmem, size = 0x2000, scoped, tag = 'input window, operand 0, single buffered']
    #allocation4 [shape = 's32[1]{0}', space=sflag, size = 0x4, scoped, tag = 'scoped memory for tpu_custom_call.1']
    #allocation5 [shape = 's32[1]{0}', space=sflag, size = 0x4, scoped, tag = 'scoped memory for tpu_custom_call.1']
    #allocation6 [shape = 'u8[32768]{0}', space=vmem, size = 0x8000, scoped, tag = 'input window, operand 3, single buffered']
    #allocation7 [shape = 's32[1]{0}', space=sflag, size = 0x4, scoped, tag = 'scoped memory for tpu_custom_call.1']
    #allocation8 [shape = 'u8[8192]{0}', space=vmem, size = 0x2000, scoped, tag = 'output window, operand 0, single buffered']
    %10 = vsyncpa [#allocation4], 0
    %11 = vsyncpa [#allocation7], 0
    %12 = vsyncpa [#allocation5], 0
    // Predicated region
    $region2: #{tpu_custom_call.1} parent=1 // pred_check
      _
    $region3: #{tpu_custom_call.1} parent=1 // pred_check_branch
      %14 = sbr.rel (0) target = $region5
    $region4: #{tpu_custom_call.1} parent=1 // pred_region
      %s16 = ssub.s32 256, 256
      %17 = vsyncadd [#allocation4], %s16
      %s18 = sshll.u32 [#allocation3], 4
      %s19 = int_to_ptr.vmem [resolvable:$true] %s18
      %24 = dma.hbm_to_vmem [thread:$0]  %s0, 256, %s19, [#allocation4], 128, 128, 8
    $region5: #{tpu_custom_call.1} parent=1 // pred_fallthru
      _
    // Predicated region
    $region6: #{tpu_custom_call.1} parent=1 // pred_check
      _
    $region7: #{tpu_custom_call.1} parent=1 // pred_check_branch
      %26 = sbr.rel (0) target = $region9
    $region8: #{tpu_custom_call.1} parent=1 // pred_region
      _
    $region9: #{tpu_custom_call.1} parent=1 // pred_fallthru
      _
    // Predicated region
    $region10: #{tpu_custom_call.1} parent=1 // pred_check
      _
    $region11: #{tpu_custom_call.1} parent=1 // pred_check_branch
      %28 = sbr.rel (0) target = $region13
    $region12: #{tpu_custom_call.1} parent=1 // pred_region
      _
    $region13: #{tpu_custom_call.1} parent=1 // pred_fallthru
      _
    // Predicated region
    $region14: #{tpu_custom_call.1} parent=1 // pred_check
      _
    $region15: #{tpu_custom_call.1} parent=1 // pred_check_branch
      %30 = sbr.rel (0) target = $region17
    $region16: #{tpu_custom_call.1} parent=1 // pred_region
      %s32 = ssub.s32 1024, 1024
      %33 = vsyncadd [#allocation7], %s32
      %s34 = sshll.u32 [#allocation6], 4
      %s35 = int_to_ptr.vmem [resolvable:$true] %s34
      %40 = dma.hbm_to_vmem [thread:$0]  %s3, 1024, %s35, [#allocation7], 64, 64, 4
    $region17: #{tpu_custom_call.1} parent=1 // pred_fallthru
      _
    // Predicated region
    $region18: #{tpu_custom_call.1} parent=1 // pred_check
      _
    $region19: #{tpu_custom_call.1} parent=1 // pred_check_branch
      %42 = sbr.rel (0) target = $region21
    $region20: #{tpu_custom_call.1} parent=1 // pred_region
      _
    $region21: #{tpu_custom_call.1} parent=1 // pred_fallthru
      _
    // Predicated region
    $region22: #{tpu_custom_call.1} parent=1 // pred_check
      _
    $region23: #{tpu_custom_call.1} parent=1 // pred_check_branch
      %44 = sbr.rel (0) target = $region25
    $region24: #{tpu_custom_call.1} parent=1 // pred_region
      %45 = dma.done [#allocation4], 256
    $region25: #{tpu_custom_call.1} parent=1 // pred_fallthru
      _
    // Predicated region
    $region26: #{tpu_custom_call.1} parent=1 // pred_check
      _
    $region27: #{tpu_custom_call.1} parent=1 // pred_check_branch
      %47 = sbr.rel (0) target = $region29
    $region28: #{tpu_custom_call.1} parent=1 // pred_region
      %48 = dma.done [#allocation7], 1024
    $region29: #{tpu_custom_call.1} parent=1 // pred_fallthru
      _
    %p50 = scmp.eq.s32.totalorder 0, 0
    // Predicated region
    $region30: #{tpu_custom_call.1} parent=1 // pred_check
      %p51 = pneg %p50
    $region31: #{tpu_custom_call.1} parent=1 // pred_check_branch
      %53 = sbr.rel (%p51) target = $region33
    $region32: #{tpu_custom_call.1} parent=1 // pred_region
      %v54 = vld [vmem:[#allocation3] sm:$0xff]
      %v55 = vld [vmem:[#allocation3 + $0x8] sm:$0xff]
      %v56 = vlaneseq
      %v57 = vand.u32 %v56, 127
      %vm58 = vcmp.lt.s32.totalorder %v57, 32
      %v59 = vsel %vm58, 1, 0
      %vm60 = vcmp.eq.s32.totalorder %v59, 1
      %v61 = vsel %vm60, %v54, 0.0
      %v62 = vsel %vm60, %v55, 0.0
      %63 = vadd.xlane.f32.xlu0 %v61
      %v64 = vpop.xlane.xlu0 %63
      %65 = vadd.xlane.f32.xlu0 %v62
      %v66 = vpop.xlane.xlu0 %65
      %v67 = vmul.f32 %v64, 0.03125
      %v68 = vmul.f32 %v66, 0.03125
      %v69 = vmul.f32 %v61, %v61
      %v70 = vmul.f32 %v62, %v62
      %71 = vadd.xlane.f32.xlu0 %v69
      %v72 = vpop.xlane.xlu0 %71
      %73 = vadd.xlane.f32.xlu0 %v70
      %v74 = vpop.xlane.xlu0 %73
      %v75 = vmul.f32 %v72, 0.03125
      %v76 = vmul.f32 %v74, 0.03125
      %v77 = vmul.f32 %v67, %v67
      %v78 = vmul.f32 %v68, %v68
      %v79 = vsub.f32 %v75, %v77
      %v80 = vsub.f32 %v76, %v78
      %v81 = vmax.f32 %v79, 0.0
      %v82 = vmax.f32 %v80, 0.0
      %v83 = vsub.f32 %v61, %v67
      %v84 = vsub.f32 %v62, %v68
      %v85 = vadd.f32 %v81, 1e-05
      %v86 = vadd.f32 %v82, 1e-05
      %v87 = vrsqrt.pop %v85
      %v88 = vrsqrt.pop %v86
      %v89 = vmul.f32 %v83, %v87
      %v90 = vmul.f32 %v84, %v88
      %v91 = vld [vmem:[%s1] sm:$0x1]
      %v93 = vlaneseq
      %v94 = vshrl.u32 %v93, 7
      %v95 = vsub.s32 0, %v94
      %v96 = vrot.slane %v91, %v95
      %v98 = vmul.f32 %v89, %v96
      %v99 = vmul.f32 %v90, %v96
      %v100 = vld [vmem:[%s2] sm:$0x1]
      %v102 = vlaneseq
      %v103 = vshrl.u32 %v102, 7
      %v104 = vsub.s32 0, %v103
      %v105 = vrot.slane %v100, %v104
      %v107 = vadd.f32 %v98, %v105
      %v108 = vadd.f32 %v99, %v105
      %v109 = vpack.c.bf16 %v108, %v107
      %v111 = vunpack.c.l.b16 %v109
      %v112 = vunpack.c.h.b16 %v109
      %v113 = vpack.c.b16 %v111, %v111
      %v114 = vpack.c.b16 %v112, %v112
      %117 = vst [vmem:[#allocation2] sm:$0xf] %v113
      %118 = vst [vmem:[#allocation2 + $0x4] sm:$0xf] %v114
    $region33: #{tpu_custom_call.1} parent=1 // pred_fallthru
      _
    %v119 = vld [vmem:[#allocation2] sm:$0xf]
    %v120 = vld [vmem:[#allocation2 + $0x4] sm:$0xf]
    %v121 = vld [vmem:[#allocation6] sm:$0xf]
    %v122 = vld [vmem:[#allocation6 + $0x4] sm:$0xf]
    %v123 = vld [vmem:[#allocation6 + $0x8] sm:$0xf]
    %v124 = vld [vmem:[#allocation6 + $0xc] sm:$0xf]
    %v125 = vld [vmem:[#allocation6 + $0x10] sm:$0xf]
    %v126 = vld [vmem:[#allocation6 + $0x14] sm:$0xf]
    %v127 = vld [vmem:[#allocation6 + $0x18] sm:$0xf]
    %v128 = vld [vmem:[#allocation6 + $0x1c] sm:$0xf]
    %v129 = vld [vmem:[#allocation6 + $0x20] sm:$0xf]
    %v130 = vld [vmem:[#allocation6 + $0x24] sm:$0xf]
    %v131 = vld [vmem:[#allocation6 + $0x28] sm:$0xf]
    %v132 = vld [vmem:[#allocation6 + $0x2c] sm:$0xf]
    %v133 = vld [vmem:[#allocation6 + $0x30] sm:$0xf]
    %v134 = vld [vmem:[#allocation6 + $0x34] sm:$0xf]
    %v135 = vld [vmem:[#allocation6 + $0x38] sm:$0xf]
    %v136 = vld [vmem:[#allocation6 + $0x3c] sm:$0xf]
    %v137 = vld [vmem:[%s4] sm:$0x1]
    %v139 = vlaneseq
    %v140 = vshrl.u32 %v139, 7
    %v141 = vsub.s32 0, %v140
    %v142 = vrot.slane %v137, %v141
    %v146 = vunpack.c.l.b16 %v119
    %v147 = vunpack.c.l.b16 %v120
    %v148 = vpack.c.b16 %v147, %v146
    %v166 = vunpack.c.l.b16 %v121
    %v167 = vunpack.c.l.b16 %v122
    %v168 = vunpack.c.l.b16 %v123
    %v169 = vunpack.c.l.b16 %v124
    %v170 = vunpack.c.l.b16 %v125
    %v171 = vunpack.c.l.b16 %v126
    %v172 = vunpack.c.l.b16 %v127
    %v173 = vunpack.c.l.b16 %v128
    %v174 = vunpack.c.l.b16 %v129
    %v175 = vunpack.c.l.b16 %v130
    %v176 = vunpack.c.l.b16 %v131
    %v177 = vunpack.c.l.b16 %v132
    %v178 = vunpack.c.l.b16 %v133
    %v179 = vunpack.c.l.b16 %v134
    %v180 = vunpack.c.l.b16 %v135
    %v181 = vunpack.c.l.b16 %v136
    %v182 = vpack.c.b16 %v167, %v166
    %v183 = vpack.c.b16 %v169, %v168
    %v184 = vpack.c.b16 %v171, %v170
    %v185 = vpack.c.b16 %v173, %v172
    %v186 = vpack.c.b16 %v175, %v174
    %v187 = vpack.c.b16 %v177, %v176
    %v188 = vpack.c.b16 %v179, %v178
    %v189 = vpack.c.b16 %v181, %v180
    %198 = vmatprep.subr.bf16.mxu0 0
    %199 = vmatpush1.bf16.msra.mxu0 %v189
    %200 = vmatprep.subr.bf16.mxu0 0
    %201 = vmatpush1.bf16.msra.mxu0 %v188
    %202 = vmatprep.subr.bf16.mxu0 0
    %203 = vmatpush1.bf16.msra.mxu0 %v187
    %204 = vmatprep.subr.bf16.mxu0 0
    %205 = vmatpush1.bf16.msra.mxu0 %v186
    %206 = vmatprep.subr.bf16.mxu0 0
    %207 = vmatpush1.bf16.msra.mxu0 %v185
    %208 = vmatprep.subr.bf16.mxu0 0
    %209 = vmatpush1.bf16.msra.mxu0 %v184
    %210 = vmatprep.subr.bf16.mxu0 0
    %211 = vmatpush1.bf16.msra.mxu0 %v183
    %212 = vmatprep.subr.bf16.mxu0 0
    %213 = vmatpush1.bf16.msra.mxu0 %v182
    %214 = vmatprep.subr.bf16.mxu0 0
    %215 = vmatpush2.bf16.msra.mxu0 0
    %216 = vmatprep.subr.bf16.mxu0 0
    %217 = vmatpush2.bf16.msra.mxu0 0
    %218 = vmatprep.subr.bf16.mxu0 0
    %219 = vmatpush2.bf16.msra.mxu0 0
    %220 = vmatprep.subr.bf16.mxu0 0
    %221 = vmatpush2.bf16.msra.mxu0 0
    %222 = vmatprep.subr.bf16.mxu0 0
    %223 = vmatpush2.bf16.msra.mxu0 0
    %224 = vmatprep.subr.bf16.mxu0 0
    %225 = vmatpush2.bf16.msra.mxu0 0
    %226 = vmatprep.subr.bf16.mxu0 0
    %227 = vmatpush2.bf16.msra.mxu0 0
    %228 = vmatprep.subr.bf16.mxu0 0
    %229 = vmatpush2.bf16.msra.mxu0 0
    %230 = vmatprep.mubr.bf16.mxu0 0
    %231 = vmatmul.mubr.bf16.gmra.mxu0 %v148
    %v232 = vpop.f32.mrf.mxu0
    %v233 = vadd.f32 %v142, %v232
    %v234 = vpop.f32.mrf.mxu0
    %v235 = vpop.f32.mrf.mxu0
    %v236 = vadd.f32 %v142, %v235
    %v237 = vpop.f32.mrf.mxu0
    %238 = vdwg.mxu0
    %v239 = vld [vmem:[#allocation3] sm:$0xff]
    %v240 = vld [vmem:[#allocation3 + $0x8] sm:$0xff]
    %v241 = vadd.f32 %v233, %v239
    %v242 = vadd.f32 %v236, %v240
    %243 = vst [vmem:[#allocation8] sm:$0xff] %v241
    %244 = vst [vmem:[#allocation8 + $0x8] sm:$0xff] %v242
    // Predicated region
    $region34: #{tpu_custom_call.1} parent=1 // pred_check
      _
    $region35: #{tpu_custom_call.1} parent=1 // pred_check_branch
      %246 = sbr.rel (0) target = $region37
    $region36: #{tpu_custom_call.1} parent=1 // pred_region
      %s248 = ssub.s32 256, 256
      %249 = vsyncadd [#allocation5], %s248
      %s250 = sshll.u32 [#allocation8], 4
      %s251 = int_to_ptr.vmem [resolvable:$true] %s250
      %256 = dma.vmem_to_hbm [thread:$0]  %s251, 256, %s5, [#allocation5], 128, 128, 8
    $region37: #{tpu_custom_call.1} parent=1 // pred_fallthru
      _
    // Predicated region
    $region38: #{tpu_custom_call.1} parent=1 // pred_check
      _
    $region39: #{tpu_custom_call.1} parent=1 // pred_check_branch
      %258 = sbr.rel (0) target = $region41
    $region40: #{tpu_custom_call.1} parent=1 // pred_region
      %259 = dma.done [#allocation5], 256
    $region41: #{tpu_custom_call.1} parent=1 // pred_fallthru
      _
    %260 = vsyncpa [#allocation4], 1
    %261 = vsyncpa [#allocation7], 1
    %262 = vsyncpa [#allocation5], 1

</llo_original>
